<compile_context>
chip_gen: v7x
topology: tpu7x:2x2x1
jax: 0.10.0
libtpu: 0.0.40
codegen_flags: <defaults>
</compile_context>

<pallas_src>
import functools

import jax
import jax.numpy as jnp
from jax.experimental import pallas as pl
from jax.experimental.pallas import tpu as pltpu


def _round_up(x, m):
    return (x + m - 1) // m * m


def _fused_mlp_kernel(x_ref, *refs, num_layers, epi_dtype):
    """refs = (w0, b0, w1, b1, ..., w_{L-1}, b_{L-1}, o_ref).

    w_l is pre-transposed (Cin_pad, Cout_pad) bf16; b_l is (1, Cout_pad) f32.
    All layers run back-to-back with activations held on-chip.
    """
    o_ref = refs[-1]
    h = x_ref[...]                                        # (tb, C0) bf16
    for l in range(num_layers):
        w = refs[2 * l][...]                              # (Cin_p, Cout_p) bf16
        b = refs[2 * l + 1][...]                          # (1, Cout_p) f32
        acc = jnp.dot(h, w, preferred_element_type=jnp.float32)   # MXU, f32 acc
        if l != num_layers - 1:
            # Bias + ReLU epilogue in epi_dtype (bf16 on v6e/v7x, f32 on v5e),
            # then bf16 for the next MXU input.
            z = acc.astype(epi_dtype) + b.astype(epi_dtype)
            h = jnp.maximum(z, 0).astype(jnp.bfloat16)
        else:
            o_ref[...] = (acc + b).astype(o_ref.dtype)    # final bias in f32


def init_sparse_mlp_params(key, channel_sizes, weight_sparsity):
    """Mirrors SparseLinear.__init__: W ~ randn(out, in) with a random fraction
    `weight_sparsity` zeroed; b ~ uniform[0,1)(out)."""
    params = []
    for in_c, out_c in zip(channel_sizes[:-1], channel_sizes[1:]):
        key, kw, km, kb = jax.random.split(key, 4)
        w = jax.random.normal(kw, (out_c, in_c), dtype=jnp.float32)
        drop_mask = jax.random.uniform(km, (out_c, in_c)) < weight_sparsity
        w = jnp.where(drop_mask, 0.0, w)                  # random_fraction_sparsifier
        b = jax.random.uniform(kb, (out_c,), dtype=jnp.float32)
        params.append((w, b))
    return params


def prepare_sparse_mlp_params(params):
    """One-time layout plumbing (hoisted out of the forward pass):
    pad channels, transpose weights to (Cin, Cout), cast to bf16, pad biases.

    First-layer K is only sublane-padded (mult of 16); every output/inner
    channel is lane-padded to 128 so activations and the output stay
    lane-dense (no masked vst).  Padded lanes carry exact zeros.
    """
    in_f = params[0][0].shape[1]
    c_pad = [_round_up(in_f, 16)]                          # entry K: no 128 pad
    for w, _ in params:
        c_pad.append(_round_up(w.shape[0], 128))

    weights, biases = [], []
    for l, (w, b) in enumerate(params):
        out_c, in_c = w.shape
        cin_p, cout_p = c_pad[l], c_pad[l + 1]
        w_p = jnp.zeros((cin_p, cout_p), jnp.bfloat16)
        w_p = w_p.at[:in_c, :out_c].set(w.T.astype(jnp.bfloat16))
        b_p = jnp.zeros((1, cout_p), jnp.float32).at[0, :out_c].set(b)
        weights.append(w_p)
        biases.append(b_p)
    return weights, biases


@functools.partial(jax.jit,
                   static_argnames=("out_features", "batch_tile", "bf16_epilogue"))
def sparse_mlp_forward(x, weights, biases, *, out_features,
                       batch_tile=512, bf16_epilogue=False):
    """Fused SparseMLP forward: one pallas_call for the whole stack."""
    batch, in_f = x.shape
    num_layers = len(weights)
    c0 = weights[0].shape[0]                               # sublane-padded entry K
    out_pad = weights[-1].shape[1]

    # Weights/biases are grid-invariant → resident in VMEM across the batch grid.
    resident_bytes = sum(int(w.size) * 2 + int(b.size) * 4
                         for w, b in zip(weights, biases))

    # Batch tiling: tb multiple of 16 (bf16 sublane packing); padded batch is a
    # multiple of tb so the grid stays pipelined with bounded per-step blocks.
    tb = _round_up(min(batch_tile, _round_up(batch, 16)), 16)
    # Bound per-step VMEM (double-buffered in/out activation blocks + resident
    # params + slack for compiler-managed intermediates) against a budget that
    # also fits v7x's 64 MiB-per-TC VMEM (32 MiB scoped default).
    budget = 24 * 1024 * 1024
    def _act_bytes(t):
        return 2 * t * c0 * 2 + 2 * t * out_pad * 4 + 4 * t * out_pad * 4
    while tb > 16 and _act_bytes(tb) + resident_bytes > budget:
        tb = _round_up(tb // 2, 16)
    bp = _round_up(batch, tb)

    # bf16 activation input: halves HBM traffic; padded rows/cols are exact zeros.
    x_p = jnp.zeros((bp, c0), jnp.bfloat16).at[:batch, :in_f].set(
        x.astype(jnp.bfloat16))

    epi_dtype = jnp.bfloat16 if bf16_epilogue else jnp.float32

    operands = [x_p]
    in_specs = [pl.BlockSpec((tb, c0), lambda i: (i, 0))]
    flops = 0
    for w_p, b_p in zip(weights, biases):
        cin_p, cout_p = w_p.shape
        operands += [w_p, b_p]
        in_specs += [
            pl.BlockSpec((cin_p, cout_p), lambda i: (0, 0)),
            pl.BlockSpec((1, cout_p), lambda i: (0, 0)),
        ]
        flops += 2 * bp * cin_p * cout_p

    bytes_accessed = bp * c0 * 2 + resident_bytes + bp * out_pad * 4
    vmem_limit = int(min(max(2 * (_act_bytes(tb) + resident_bytes),
                             32 * 1024 * 1024),
                         64 * 1024 * 1024))

    out = pl.pallas_call(
        functools.partial(_fused_mlp_kernel, num_layers=num_layers,
                          epi_dtype=epi_dtype),
        out_shape=jax.ShapeDtypeStruct((bp, out_pad), jnp.float32),
        grid=(bp // tb,),
        in_specs=in_specs,
        out_specs=pl.BlockSpec((tb, out_pad), lambda i: (i, 0)),
        compiler_params=pltpu.CompilerParams(
            dimension_semantics=("parallel",),
            vmem_limit_bytes=vmem_limit),
        cost_estimate=pl.CostEstimate(
            flops=flops, transcendentals=0, bytes_accessed=bytes_accessed),
    )(*operands)

    # Slice padded rows / lanes back out (fused into the jitted wrapper;
    # downstream consumers that accept the padded layout can skip this).
    return out[:batch, :out_features]


if __name__ == "__main__":
    key = jax.random.PRNGKey(0)
    channel_sizes = [32, 64, 48, 16]
    weight_sparsity = 0.5
    batch = 8

    kx, kp = jax.random.split(key)
    x = jax.random.normal(kx, (batch, channel_sizes[0]), dtype=jnp.float32)
    params = init_sparse_mlp_params(kp, channel_sizes, weight_sparsity)

    # One-time layout prep (padded / transposed bf16 weights, padded f32 biases).
    weights, biases = prepare_sparse_mlp_params(params)

    # bf16 epilogue only where the VPU has bf16 VALUs (v6e / v7x); f32 on v5e etc.
    kind = jax.devices()[0].device_kind.lower()
    bf16_epi = ("v6" in kind) or ("v7" in kind)

    out = sparse_mlp_forward(x, weights, biases,
                             out_features=channel_sizes[-1],
                             bf16_epilogue=bf16_epi)
    out = jax.block_until_ready(out)
    assert out.shape == (batch, channel_sizes[-1])

    # (1) Tight check vs. a JAX reference that mimics the kernel's numerics
    #     (bf16 MXU inputs, f32 accumulation, epilogue dtype) — verifies the
    #     fusion / padding / layout logic.
    epi = jnp.bfloat16 if bf16_epi else jnp.float32
    h = x.astype(jnp.bfloat16)
    for i, (w, b) in enumerate(params):
        acc = jnp.dot(h, w.T.astype(jnp.bfloat16),
                      preferred_element_type=jnp.float32)
        if i != len(params) - 1:
            z = acc.astype(epi) + b.astype(epi)
            h = jnp.maximum(z, 0).astype(jnp.bfloat16)
        else:
            ref_match = acc + b
    assert jnp.allclose(out, ref_match, atol=5e-2, rtol=5e-2)

    # (2) Looser sanity check vs. the exact fp32 PyTorch-equivalent forward
    #     (bf16 inputs are a deliberate ~1% numerics change).
    ref_f32 = x
    for i, (w, b) in enumerate(params):
        ref_f32 = ref_f32 @ w.T + b
        if i != len(params) - 1:
            ref_f32 = jnp.maximum(ref_f32, 0.0)
    assert jnp.allclose(out, ref_f32, atol=5e-1, rtol=5e-2)

    print("KERNEL_OK")
</pallas_src>

<mosaic_0001>
module attributes {stable_mosaic.version = 11 : i64} {
  func.func @_fused_mlp_kernel(%arg0: i32, %arg1: memref<16x32xbf16, #tpu.memory_space<vmem>>, %arg2: memref<32x128xbf16, #tpu.memory_space<vmem>>, %arg3: memref<1x128xf32, #tpu.memory_space<vmem>>, %arg4: memref<128x128xbf16, #tpu.memory_space<vmem>>, %arg5: memref<1x128xf32, #tpu.memory_space<vmem>>, %arg6: memref<128x128xbf16, #tpu.memory_space<vmem>>, %arg7: memref<1x128xf32, #tpu.memory_space<vmem>>, %arg8: memref<16x128xf32, #tpu.memory_space<vmem>>) attributes {dimension_semantics = [#tpu.dimension_semantics<parallel>], iteration_bounds = array<i64: 1>, scalar_prefetch = 0 : i64, scratch_operands = 0 : i64, tpu.core_type = #tpu.core_type<tc>, window_params = [{transform_indices = @transform_0, window_bounds = array<i64: 16, 32>}, {pipeline_mode = #tpu.pipeline_mode<synchronous>, transform_indices = @transform_1, window_bounds = array<i64: 32, 128>}, {pipeline_mode = #tpu.pipeline_mode<synchronous>, transform_indices = @transform_2, window_bounds = array<i64: 1, 128>}, {pipeline_mode = #tpu.pipeline_mode<synchronous>, transform_indices = @transform_3, window_bounds = array<i64: 128, 128>}, {pipeline_mode = #tpu.pipeline_mode<synchronous>, transform_indices = @transform_4, window_bounds = array<i64: 1, 128>}, {pipeline_mode = #tpu.pipeline_mode<synchronous>, transform_indices = @transform_5, window_bounds = array<i64: 128, 128>}, {pipeline_mode = #tpu.pipeline_mode<synchronous>, transform_indices = @transform_6, window_bounds = array<i64: 1, 128>}, {transform_indices = @transform_7, window_bounds = array<i64: 16, 128>}]} {
    %c0 = arith.constant 0 : index
    %c0_0 = arith.constant 0 : index
    %0 = vector.load %arg1[%c0, %c0_0] : memref<16x32xbf16, #tpu.memory_space<vmem>>, vector<16x32xbf16>
    %c0_1 = arith.constant 0 : index
    %c0_2 = arith.constant 0 : index
    %1 = vector.load %arg2[%c0_1, %c0_2] : memref<32x128xbf16, #tpu.memory_space<vmem>>, vector<32x128xbf16>
    %c0_3 = arith.constant 0 : index
    %c0_4 = arith.constant 0 : index
    %2 = vector.load %arg3[%c0_3, %c0_4] : memref<1x128xf32, #tpu.memory_space<vmem>>, vector<1x128xf32>
    %cst = arith.constant dense<0.000000e+00> : vector<16x128xf32>
    %3 = tpu.matmul %0, %1, %cst {dimension_numbers = #tpu.dot_dimension_numbers<[1], [0], [0], [1], [0, 0, 1, 1], [], []>} : vector<16x32xbf16>, vector<32x128xbf16>, vector<16x128xf32> -> vector<16x128xf32>
    %4 = vector.broadcast %2 : vector<1x128xf32> to vector<16x128xf32>
    %5 = arith.addf %3, %4 : vector<16x128xf32>
    %cst_5 = arith.constant 0.000000e+00 : f32
    %6 = vector.broadcast %cst_5 : f32 to vector<16x128xf32>
    %7 = arith.maximumf %5, %6 : vector<16x128xf32>
    %8 = arith.truncf %7 : vector<16x128xf32> to vector<16x128xbf16>
    %c0_6 = arith.constant 0 : index
    %c0_7 = arith.constant 0 : index
    %9 = vector.load %arg4[%c0_6, %c0_7] : memref<128x128xbf16, #tpu.memory_space<vmem>>, vector<128x128xbf16>
    %c0_8 = arith.constant 0 : index
    %c0_9 = arith.constant 0 : index
    %10 = vector.load %arg5[%c0_8, %c0_9] : memref<1x128xf32, #tpu.memory_space<vmem>>, vector<1x128xf32>
    %cst_10 = arith.constant dense<0.000000e+00> : vector<16x128xf32>
    %11 = tpu.matmul %8, %9, %cst_10 {dimension_numbers = #tpu.dot_dimension_numbers<[1], [0], [0], [1], [0, 0, 1, 1], [], []>} : vector<16x128xbf16>, vector<128x128xbf16>, vector<16x128xf32> -> vector<16x128xf32>
    %12 = vector.broadcast %10 : vector<1x128xf32> to vector<16x128xf32>
    %13 = arith.addf %11, %12 : vector<16x128xf32>
    %cst_11 = arith.constant 0.000000e+00 : f32
    %14 = vector.broadcast %cst_11 : f32 to vector<16x128xf32>
    %15 = arith.maximumf %13, %14 : vector<16x128xf32>
    %16 = arith.truncf %15 : vector<16x128xf32> to vector<16x128xbf16>
    %c0_12 = arith.constant 0 : index
    %c0_13 = arith.constant 0 : index
    %17 = vector.load %arg6[%c0_12, %c0_13] : memref<128x128xbf16, #tpu.memory_space<vmem>>, vector<128x128xbf16>
    %c0_14 = arith.constant 0 : index
    %c0_15 = arith.constant 0 : index
    %18 = vector.load %arg7[%c0_14, %c0_15] : memref<1x128xf32, #tpu.memory_space<vmem>>, vector<1x128xf32>
    %cst_16 = arith.constant dense<0.000000e+00> : vector<16x128xf32>
    %19 = tpu.matmul %16, %17, %cst_16 {dimension_numbers = #tpu.dot_dimension_numbers<[1], [0], [0], [1], [0, 0, 1, 1], [], []>} : vector<16x128xbf16>, vector<128x128xbf16>, vector<16x128xf32> -> vector<16x128xf32>
    %20 = vector.broadcast %18 : vector<1x128xf32> to vector<16x128xf32>
    %21 = arith.addf %19, %20 : vector<16x128xf32>
    %c0_17 = arith.constant 0 : index
    %c0_18 = arith.constant 0 : index
    %22 = vector.load %arg8[%c0_17, %c0_18] : memref<16x128xf32, #tpu.memory_space<vmem>>, vector<16x128xf32>
    tpu.vector_store %arg8[%c0_17, %c0_18], %21 {strides = array<i32>} : memref<16x128xf32, #tpu.memory_space<vmem>>, vector<16x128xf32>,
    return
  }
  func.func @transform_0(%arg0: i32) -> (i32, i32) {
    %c0_i32 = arith.constant 0 : i32
    %c0_i32_0 = arith.constant 0 : i32
    return %arg0, %c0_i32 : i32, i32
  }
  func.func @transform_1(%arg0: i32) -> (i32, i32) {
    %c0_i32 = arith.constant 0 : i32
    %c0_i32_0 = arith.constant 0 : i32
    %c0_i32_1 = arith.constant 0 : i32
    return %c0_i32, %c0_i32_0 : i32, i32
  }
  func.func @transform_2(%arg0: i32) -> (i32, i32) {
    %c0_i32 = arith.constant 0 : i32
    %c0_i32_0 = arith.constant 0 : i32
    %c0_i32_1 = arith.constant 0 : i32
    return %c0_i32, %c0_i32_0 : i32, i32
  }
  func.func @transform_3(%arg0: i32) -> (i32, i32) {
    %c0_i32 = arith.constant 0 : i32
    %c0_i32_0 = arith.constant 0 : i32
    %c0_i32_1 = arith.constant 0 : i32
    return %c0_i32, %c0_i32_0 : i32, i32
  }
  func.func @transform_4(%arg0: i32) -> (i32, i32) {
    %c0_i32 = arith.constant 0 : i32
    %c0_i32_0 = arith.constant 0 : i32
    %c0_i32_1 = arith.constant 0 : i32
    return %c0_i32, %c0_i32_0 : i32, i32
  }
  func.func @transform_5(%arg0: i32) -> (i32, i32) {
    %c0_i32 = arith.constant 0 : i32
    %c0_i32_0 = arith.constant 0 : i32
    %c0_i32_1 = arith.constant 0 : i32
    return %c0_i32, %c0_i32_0 : i32, i32
  }
  func.func @transform_6(%arg0: i32) -> (i32, i32) {
    %c0_i32 = arith.constant 0 : i32
    %c0_i32_0 = arith.constant 0 : i32
    %c0_i32_1 = arith.constant 0 : i32
    return %c0_i32, %c0_i32_0 : i32, i32
  }
  func.func @transform_7(%arg0: i32) -> (i32, i32) {
    %c0_i32 = arith.constant 0 : i32
    %c0_i32_0 = arith.constant 0 : i32
    return %arg0, %c0_i32 : i32, i32
  }
}

</mosaic_0001>

<llo_original>
// kernel: sparse_mlp_forward.1
$region0: #{sparse_mlp_forward.1}
  #allocation0 [shape = 'u32[]', space=smem, size = 0x4, offset = 0x4, fixed_abs, tag = 'smem constant byte address 0x4 - core index']
  #allocation1 [shape = 'u32[144,128]{1,0:T(1,128)}', space=vmem, size = 0x12000, scoped, tag = 'internal scratch']
  %s0 = inlined_call_operand.vmem [shape: bf16[16,32], index: 0, kind: input, shape index: {}]
  %s1 = inlined_call_operand.vmem [shape: bf16[32,128], index: 1, kind: input, shape index: {}]
  %s2 = inlined_call_operand.vmem [shape: f32[1,128], index: 2, kind: input, shape index: {}]
  %s3 = inlined_call_operand.hbm [shape: bf16[128,128], index: 3, kind: input, shape index: {}]
  %s4 = inlined_call_operand.vmem [shape: f32[1,128], index: 4, kind: input, shape index: {}]
  %s5 = inlined_call_operand.hbm [shape: bf16[128,128], index: 5, kind: input, shape index: {}]
  %s6 = inlined_call_operand.vmem [shape: f32[1,128], index: 6, kind: input, shape index: {}]
  %s7 = inlined_call_operand.vmem [shape: f32[16,128], index: 7, kind: output, shape index: {}]
  %s8 = sld [smem:[#allocation0]]
  $region46: #{sparse_mlp_forward.1} parent=0
    _
  %s10 = ssub.s32 1, %s8
  %s11 = scalar_select 0, %s10, %s8
  $region1: #{sparse_mlp_forward.1} parent=0
    #allocation2 [shape = 'u8[32768]{0}', space=vmem, size = 0x8000, scoped, tag = 'input window, operand 3, single buffered']
    #allocation3 [shape = 's32[1]{0}', space=sflag, size = 0x4, scoped, tag = 'scoped memory for sparse_mlp_forward.1']
    #allocation4 [shape = 'u8[32768]{0}', space=vmem, size = 0x8000, scoped, tag = 'input window, operand 5, single buffered']
    #allocation5 [shape = 's32[1]{0}', space=sflag, size = 0x4, scoped, tag = 'scoped memory for sparse_mlp_forward.1']
    %12 = vsyncpa [#allocation3], 0
    %13 = vsyncpa [#allocation5], 0
    // Predicated region
    $region2: #{sparse_mlp_forward.1} parent=1 // pred_check
      _
    $region3: #{sparse_mlp_forward.1} parent=1 // pred_check_branch
      %15 = sbr.rel (0) target = $region5
    $region4: #{sparse_mlp_forward.1} parent=1 // pred_region
      _
    $region5: #{sparse_mlp_forward.1} parent=1 // pred_fallthru
      _
    // Predicated region
    $region6: #{sparse_mlp_forward.1} parent=1 // pred_check
      _
    $region7: #{sparse_mlp_forward.1} parent=1 // pred_check_branch
      %17 = sbr.rel (0) target = $region9
    $region8: #{sparse_mlp_forward.1} parent=1 // pred_region
      _
    $region9: #{sparse_mlp_forward.1} parent=1 // pred_fallthru
      _
    // Predicated region
    $region10: #{sparse_mlp_forward.1} parent=1 // pred_check
      _
    $region11: #{sparse_mlp_forward.1} parent=1 // pred_check_branch
      %19 = sbr.rel (0) target = $region13
    $region12: #{sparse_mlp_forward.1} parent=1 // pred_region
      _
    $region13: #{sparse_mlp_forward.1} parent=1 // pred_fallthru
      _
    // Predicated region
    $region14: #{sparse_mlp_forward.1} parent=1 // pred_check
      _
    $region15: #{sparse_mlp_forward.1} parent=1 // pred_check_branch
      %21 = sbr.rel (0) target = $region17
    $region16: #{sparse_mlp_forward.1} parent=1 // pred_region
      %s23 = ssub.s32 1024, 1024
      %24 = vsyncadd [#allocation3], %s23
      %s25 = sshll.u32 [#allocation2], 4
      %s26 = int_to_ptr.vmem [resolvable:$true] %s25
      %31 = dma.hbm_to_vmem [thread:$0]  %s3, 1024, %s26, [#allocation3], 64, 64, 4
    $region17: #{sparse_mlp_forward.1} parent=1 // pred_fallthru
      _
    // Predicated region
    $region18: #{sparse_mlp_forward.1} parent=1 // pred_check
      _
    $region19: #{sparse_mlp_forward.1} parent=1 // pred_check_branch
      %33 = sbr.rel (0) target = $region21
    $region20: #{sparse_mlp_forward.1} parent=1 // pred_region
      _
    $region21: #{sparse_mlp_forward.1} parent=1 // pred_fallthru
      _
    // Predicated region
    $region22: #{sparse_mlp_forward.1} parent=1 // pred_check
      _
    $region23: #{sparse_mlp_forward.1} parent=1 // pred_check_branch
      %35 = sbr.rel (0) target = $region25
    $region24: #{sparse_mlp_forward.1} parent=1 // pred_region
      %s37 = ssub.s32 1024, 1024
      %38 = vsyncadd [#allocation5], %s37
      %s39 = sshll.u32 [#allocation4], 4
      %s40 = int_to_ptr.vmem [resolvable:$true] %s39
      %45 = dma.hbm_to_vmem [thread:$0]  %s5, 1024, %s40, [#allocation5], 64, 64, 4
    $region25: #{sparse_mlp_forward.1} parent=1 // pred_fallthru
      _
    // Predicated region
    $region26: #{sparse_mlp_forward.1} parent=1 // pred_check
      _
    $region27: #{sparse_mlp_forward.1} parent=1 // pred_check_branch
      %47 = sbr.rel (0) target = $region29
    $region28: #{sparse_mlp_forward.1} parent=1 // pred_region
      _
    $region29: #{sparse_mlp_forward.1} parent=1 // pred_fallthru
      _
    // Predicated region
    $region30: #{sparse_mlp_forward.1} parent=1 // pred_check
      _
    $region31: #{sparse_mlp_forward.1} parent=1 // pred_check_branch
      %49 = sbr.rel (0) target = $region33
    $region32: #{sparse_mlp_forward.1} parent=1 // pred_region
      %50 = dma.done [#allocation3], 1024
    $region33: #{sparse_mlp_forward.1} parent=1 // pred_fallthru
      _
    // Predicated region
    $region34: #{sparse_mlp_forward.1} parent=1 // pred_check
      _
    $region35: #{sparse_mlp_forward.1} parent=1 // pred_check_branch
      %52 = sbr.rel (0) target = $region37
    $region36: #{sparse_mlp_forward.1} parent=1 // pred_region
      %53 = dma.done [#allocation5], 1024
    $region37: #{sparse_mlp_forward.1} parent=1 // pred_fallthru
      _
    %v55 = vld [vmem:[%s0] sm:$0xf]
    %v56 = vld [vmem:[%s0 + $0x4] sm:$0xf]
    %v57 = vld [vmem:[%s1] sm:$0xf]
    %v58 = vld [vmem:[%s1 + $0x4] sm:$0xf]
    %v59 = vld [vmem:[%s1 + $0x8] sm:$0xf]
    %v60 = vld [vmem:[%s1 + $0xc] sm:$0xf]
    %v61 = vld [vmem:[%s2] sm:$0x1]
    %v63 = vlaneseq
    %v64 = vshrl.u32 %v63, 7
    %v65 = vsub.s32 0, %v64
    %v66 = vrot.slane %v61, %v65
    %v70 = vunpack.c.l.b16 %v55
    %v71 = vunpack.c.l.b16 %v56
    %v72 = vpack.c.b16 %v71, %v70
    %v77 = vunpack.c.l.b16 %v57
    %v78 = vunpack.c.l.b16 %v58
    %v79 = vunpack.c.l.b16 %v59
    %v80 = vunpack.c.l.b16 %v60
    %v81 = vpack.c.b16 %v78, %v77
    %v82 = vpack.c.b16 %v80, %v79
    %vm85 = vcmask 261120
    %v87 = vsel %vm85, %v72, 0
    %89 = vmatprep.subr.bf16.mxu0 0
    %90 = vmatpush1.bf16.msra.mxu0 %v81
    %91 = vmatprep.subr.bf16.mxu0 0
    %92 = vmatpush1.bf16.msra.mxu0 %v82
    %93 = vmatprep.subr.bf16.mxu0 0
    %94 = vmatpush1.bf16.msra.mxu0 0
    %95 = vmatprep.subr.bf16.mxu0 0
    %96 = vmatpush1.bf16.msra.mxu0 0
    %97 = vmatprep.subr.bf16.mxu0 0
    %98 = vmatpush1.bf16.msra.mxu0 0
    %99 = vmatprep.subr.bf16.mxu0 0
    %100 = vmatpush1.bf16.msra.mxu0 0
    %101 = vmatprep.subr.bf16.mxu0 0
    %102 = vmatpush1.bf16.msra.mxu0 0
    %103 = vmatprep.subr.bf16.mxu0 0
    %104 = vmatpush1.bf16.msra.mxu0 0
    %105 = vmatprep.subr.bf16.mxu0 0
    %106 = vmatpush1.bf16.msra.mxu0 0
    %107 = vmatprep.subr.bf16.mxu0 0
    %108 = vmatpush1.bf16.msra.mxu0 0
    %109 = vmatprep.subr.bf16.mxu0 0
    %110 = vmatpush1.bf16.msra.mxu0 0
    %111 = vmatprep.subr.bf16.mxu0 0
    %112 = vmatpush1.bf16.msra.mxu0 0
    %113 = vmatprep.subr.bf16.mxu0 0
    %114 = vmatpush1.bf16.msra.mxu0 0
    %115 = vmatprep.subr.bf16.mxu0 0
    %116 = vmatpush1.bf16.msra.mxu0 0
    %117 = vmatprep.subr.bf16.mxu0 0
    %118 = vmatpush1.bf16.msra.mxu0 0
    %119 = vmatprep.subr.bf16.mxu0 0
    %120 = vmatpush1.bf16.msra.mxu0 0
    %121 = vmatprep.mubr.bf16.mxu0 0
    %122 = vmatmul.mubr.bf16.gmra.mrb[0].mxu0 %v87
    %v123 = vpop.f32.mrb[0].mxu0
    %v124 = vadd.f32 %v66, %v123
    %v125 = vpop.f32.mrb[0].mxu0
    %v126 = vpop.f32.mrb[0].mxu0
    %v127 = vadd.f32 %v66, %v126
    %v128 = vpop.f32.mrb[0].mxu0
    %129 = vdwg.mxu0
    %v130 = vmax.f32 %v124, 0.0
    %v131 = vmax.f32 %v127, 0.0
    %v132 = vpack.c.bf16 %v131, %v130
    %v133 = vld [vmem:[#allocation2] sm:$0xf]
    %v134 = vld [vmem:[#allocation2 + $0x4] sm:$0xf]
    %v135 = vld [vmem:[#allocation2 + $0x8] sm:$0xf]
    %v136 = vld [vmem:[#allocation2 + $0xc] sm:$0xf]
    %v137 = vld [vmem:[#allocation2 + $0x10] sm:$0xf]
    %v138 = vld [vmem:[#allocation2 + $0x14] sm:$0xf]
    %v139 = vld [vmem:[#allocation2 + $0x18] sm:$0xf]
    %v140 = vld [vmem:[#allocation2 + $0x1c] sm:$0xf]
    %v141 = vld [vmem:[#allocation2 + $0x20] sm:$0xf]
    %v142 = vld [vmem:[#allocation2 + $0x24] sm:$0xf]
    %v143 = vld [vmem:[#allocation2 + $0x28] sm:$0xf]
    %v144 = vld [vmem:[#allocation2 + $0x2c] sm:$0xf]
    %v145 = vld [vmem:[#allocation2 + $0x30] sm:$0xf]
    %v146 = vld [vmem:[#allocation2 + $0x34] sm:$0xf]
    %v147 = vld [vmem:[#allocation2 + $0x38] sm:$0xf]
    %v148 = vld [vmem:[#allocation2 + $0x3c] sm:$0xf]
    %v149 = vld [vmem:[%s4] sm:$0x1]
    %v151 = vlaneseq
    %v152 = vshrl.u32 %v151, 7
    %v153 = vsub.s32 0, %v152
    %v154 = vrot.slane %v149, %v153
    %v172 = vunpack.c.l.b16 %v133
    %v173 = vunpack.c.l.b16 %v134
    %v174 = vunpack.c.l.b16 %v135
    %v175 = vunpack.c.l.b16 %v136
    %v176 = vunpack.c.l.b16 %v137
    %v177 = vunpack.c.l.b16 %v138
    %v178 = vunpack.c.l.b16 %v139
    %v179 = vunpack.c.l.b16 %v140
    %v180 = vunpack.c.l.b16 %v141
    %v181 = vunpack.c.l.b16 %v142
    %v182 = vunpack.c.l.b16 %v143
    %v183 = vunpack.c.l.b16 %v144
    %v184 = vunpack.c.l.b16 %v145
    %v185 = vunpack.c.l.b16 %v146
    %v186 = vunpack.c.l.b16 %v147
    %v187 = vunpack.c.l.b16 %v148
    %v188 = vpack.c.b16 %v173, %v172
    %v189 = vpack.c.b16 %v175, %v174
    %v190 = vpack.c.b16 %v177, %v176
    %v191 = vpack.c.b16 %v179, %v178
    %v192 = vpack.c.b16 %v181, %v180
    %v193 = vpack.c.b16 %v183, %v182
    %v194 = vpack.c.b16 %v185, %v184
    %v195 = vpack.c.b16 %v187, %v186
    %204 = vmatprep.subr.bf16.mxu0 0
    %205 = vmatpush1.bf16.msra.mxu0 %v188
    %206 = vmatprep.subr.bf16.mxu0 0
    %207 = vmatpush1.bf16.msra.mxu0 %v189
    %208 = vmatprep.subr.bf16.mxu0 0
    %209 = vmatpush1.bf16.msra.mxu0 %v190
    %210 = vmatprep.subr.bf16.mxu0 0
    %211 = vmatpush1.bf16.msra.mxu0 %v191
    %212 = vmatprep.subr.bf16.mxu0 0
    %213 = vmatpush1.bf16.msra.mxu0 %v192
    %214 = vmatprep.subr.bf16.mxu0 0
    %215 = vmatpush1.bf16.msra.mxu0 %v193
    %216 = vmatprep.subr.bf16.mxu0 0
    %217 = vmatpush1.bf16.msra.mxu0 %v194
    %218 = vmatprep.subr.bf16.mxu0 0
    %219 = vmatpush1.bf16.msra.mxu0 %v195
    %220 = vmatprep.subr.bf16.mxu0 0
    %221 = vmatpush1.bf16.msra.mxu0 0
    %222 = vmatprep.subr.bf16.mxu0 0
    %223 = vmatpush1.bf16.msra.mxu0 0
    %224 = vmatprep.subr.bf16.mxu0 0
    %225 = vmatpush1.bf16.msra.mxu0 0
    %226 = vmatprep.subr.bf16.mxu0 0
    %227 = vmatpush1.bf16.msra.mxu0 0
    %228 = vmatprep.subr.bf16.mxu0 0
    %229 = vmatpush1.bf16.msra.mxu0 0
    %230 = vmatprep.subr.bf16.mxu0 0
    %231 = vmatpush1.bf16.msra.mxu0 0
    %232 = vmatprep.subr.bf16.mxu0 0
    %233 = vmatpush1.bf16.msra.mxu0 0
    %234 = vmatprep.subr.bf16.mxu0 0
    %235 = vmatpush1.bf16.msra.mxu0 0
    %236 = vmatprep.mubr.bf16.mxu0 0
    %237 = vmatmul.mubr.bf16.gmra.mrb[0].mxu0 %v132
    %v238 = vpop.f32.mrb[0].mxu0
    %v239 = vadd.f32 %v154, %v238
    %v240 = vpop.f32.mrb[0].mxu0
    %v241 = vpop.f32.mrb[0].mxu0
    %v242 = vadd.f32 %v154, %v241
    %v243 = vpop.f32.mrb[0].mxu0
    %244 = vdwg.mxu0
    %v245 = vmax.f32 %v239, 0.0
    %v246 = vmax.f32 %v242, 0.0
    %v247 = vpack.c.bf16 %v246, %v245
    %v248 = vld [vmem:[#allocation4] sm:$0xf]
    %v249 = vld [vmem:[#allocation4 + $0x4] sm:$0xf]
    %v250 = vld [vmem:[#allocation4 + $0x8] sm:$0xf]
    %v251 = vld [vmem:[#allocation4 + $0xc] sm:$0xf]
    %v252 = vld [vmem:[#allocation4 + $0x10] sm:$0xf]
    %v253 = vld [vmem:[#allocation4 + $0x14] sm:$0xf]
    %v254 = vld [vmem:[#allocation4 + $0x18] sm:$0xf]
    %v255 = vld [vmem:[#allocation4 + $0x1c] sm:$0xf]
    %v256 = vld [vmem:[#allocation4 + $0x20] sm:$0xf]
    %v257 = vld [vmem:[#allocation4 + $0x24] sm:$0xf]
    %v258 = vld [vmem:[#allocation4 + $0x28] sm:$0xf]
    %v259 = vld [vmem:[#allocation4 + $0x2c] sm:$0xf]
    %v260 = vld [vmem:[#allocation4 + $0x30] sm:$0xf]
    %v261 = vld [vmem:[#allocation4 + $0x34] sm:$0xf]
    %v262 = vld [vmem:[#allocation4 + $0x38] sm:$0xf]
    %v263 = vld [vmem:[#allocation4 + $0x3c] sm:$0xf]
    %v264 = vld [vmem:[%s6] sm:$0x1]
    %v266 = vlaneseq
    %v267 = vshrl.u32 %v266, 7
    %v268 = vsub.s32 0, %v267
    %v269 = vrot.slane %v264, %v268
    %v287 = vunpack.c.l.b16 %v248
    %v288 = vunpack.c.l.b16 %v249
    %v289 = vunpack.c.l.b16 %v250
    %v290 = vunpack.c.l.b16 %v251
    %v291 = vunpack.c.l.b16 %v252
    %v292 = vunpack.c.l.b16 %v253
    %v293 = vunpack.c.l.b16 %v254
    %v294 = vunpack.c.l.b16 %v255
    %v295 = vunpack.c.l.b16 %v256
    %v296 = vunpack.c.l.b16 %v257
    %v297 = vunpack.c.l.b16 %v258
    %v298 = vunpack.c.l.b16 %v259
    %v299 = vunpack.c.l.b16 %v260
    %v300 = vunpack.c.l.b16 %v261
    %v301 = vunpack.c.l.b16 %v262
    %v302 = vunpack.c.l.b16 %v263
    %v303 = vpack.c.b16 %v288, %v287
    %v304 = vpack.c.b16 %v290, %v289
    %v305 = vpack.c.b16 %v292, %v291
    %v306 = vpack.c.b16 %v294, %v293
    %v307 = vpack.c.b16 %v296, %v295
    %v308 = vpack.c.b16 %v298, %v297
    %v309 = vpack.c.b16 %v300, %v299
    %v310 = vpack.c.b16 %v302, %v301
    %319 = vmatprep.subr.bf16.mxu0 0
    %320 = vmatpush1.bf16.msra.mxu0 %v303
    %321 = vmatprep.subr.bf16.mxu0 0
    %322 = vmatpush1.bf16.msra.mxu0 %v304
    %323 = vmatprep.subr.bf16.mxu0 0
    %324 = vmatpush1.bf16.msra.mxu0 %v305
    %325 = vmatprep.subr.bf16.mxu0 0
    %326 = vmatpush1.bf16.msra.mxu0 %v306
    %327 = vmatprep.subr.bf16.mxu0 0
    %328 = vmatpush1.bf16.msra.mxu0 %v307
    %329 = vmatprep.subr.bf16.mxu0 0
    %330 = vmatpush1.bf16.msra.mxu0 %v308
    %331 = vmatprep.subr.bf16.mxu0 0
    %332 = vmatpush1.bf16.msra.mxu0 %v309
    %333 = vmatprep.subr.bf16.mxu0 0
    %334 = vmatpush1.bf16.msra.mxu0 %v310
    %335 = vmatprep.subr.bf16.mxu0 0
    %336 = vmatpush1.bf16.msra.mxu0 0
    %337 = vmatprep.subr.bf16.mxu0 0
    %338 = vmatpush1.bf16.msra.mxu0 0
    %339 = vmatprep.subr.bf16.mxu0 0
    %340 = vmatpush1.bf16.msra.mxu0 0
    %341 = vmatprep.subr.bf16.mxu0 0
    %342 = vmatpush1.bf16.msra.mxu0 0
    %343 = vmatprep.subr.bf16.mxu0 0
    %344 = vmatpush1.bf16.msra.mxu0 0
    %345 = vmatprep.subr.bf16.mxu0 0
    %346 = vmatpush1.bf16.msra.mxu0 0
    %347 = vmatprep.subr.bf16.mxu0 0
    %348 = vmatpush1.bf16.msra.mxu0 0
    %349 = vmatprep.subr.bf16.mxu0 0
    %350 = vmatpush1.bf16.msra.mxu0 0
    %351 = vmatprep.mubr.bf16.mxu0 0
    %352 = vmatmul.mubr.bf16.gmra.mrb[0].mxu0 %v247
    %v353 = vpop.f32.mrb[0].mxu0
    %v354 = vadd.f32 %v269, %v353
    %v355 = vpop.f32.mrb[0].mxu0
    %v356 = vpop.f32.mrb[0].mxu0
    %v357 = vadd.f32 %v269, %v356
    %v358 = vpop.f32.mrb[0].mxu0
    %359 = vdwg.mxu0
    %360 = vst [vmem:[%s7] sm:$0xff] %v354
    %361 = vst [vmem:[%s7 + $0x8] sm:$0xff] %v357
    // Predicated region
    $region38: #{sparse_mlp_forward.1} parent=1 // pred_check
      _
    $region39: #{sparse_mlp_forward.1} parent=1 // pred_check_branch
      %363 = sbr.rel (0) target = $region41
    $region40: #{sparse_mlp_forward.1} parent=1 // pred_region
      _
    $region41: #{sparse_mlp_forward.1} parent=1 // pred_fallthru
      _
    // Predicated region
    $region42: #{sparse_mlp_forward.1} parent=1 // pred_check
      _
    $region43: #{sparse_mlp_forward.1} parent=1 // pred_check_branch
      %365 = sbr.rel (0) target = $region45
    $region44: #{sparse_mlp_forward.1} parent=1 // pred_region
      _
    $region45: #{sparse_mlp_forward.1} parent=1 // pred_fallthru
      _
    %366 = vsyncpa [#allocation3], 1
    %367 = vsyncpa [#allocation5], 1

</llo_original>
